<compile_context>
chip_gen: v5e
topology: v5e:2x2
jax: 0.10.0
libtpu: 0.0.40
codegen_flags: <defaults>
</compile_context>

<pallas_src>
import jax
import jax.numpy as jnp
from jax.experimental import pallas as pl
from jax.experimental.pallas import tpu as pltpu

IN_FEATURES = 50
HIDDEN = 512
OUT_FEATURES = 10


def _round_up(n, m):
    return ((n + m - 1) // m) * m


def mlp_kernel(x_ref, w1_ref, b1_ref, w2_ref, b2_ref, o_ref):
    # Cast x to bf16 in-kernel (hidden under the DMA pipeline), MXU matmul with
    # f32 accumulation, bias + ReLU on the VPU.
    x = x_ref[...].astype(jnp.bfloat16)
    h = jnp.dot(x, w1_ref[...], preferred_element_type=jnp.float32)
    h = jnp.maximum(h + b1_ref[...], 0.0)
    # Layer 2: (TB, 512) @ (512, 10) — bf16 MXU path, f32 accumulate.
    y = jnp.dot(h.astype(jnp.bfloat16), w2_ref[...],
                preferred_element_type=jnp.float32)
    o_ref[...] = (y + b2_ref[...]).astype(o_ref.dtype)


def prepare_params(w1, b1, w2, b2):
    """One-time weight prep, hoisted out of the per-call path.

    w1: (50, 512), b1: (512,) or (1, 512), w2: (512, 10), b2: (10,) or (1, 10).
    """
    return (
        w1.astype(jnp.bfloat16),
        jnp.asarray(b1, jnp.float32).reshape(1, HIDDEN),
        w2.astype(jnp.bfloat16),
        jnp.asarray(b2, jnp.float32).reshape(1, OUT_FEATURES),
    )


def mlp_forward(x, w1_bf, b1_f, w2_bf, b2_f, *, block_b=None):
    """x: (B, 50) f32. Prepared params from prepare_params(). Returns (B, 10) f32."""
    B = x.shape[0]
    if block_b is None:
        if B <= 1024:
            # Single tile (batch dim == full array dim, so any B is legal).
            block_b = B
        else:
            # Large tiles amortize the ~0.35 us/step grid overhead while keeping
            # >=2 grid steps so v7x's two TensorCores both get work.
            block_b = 1024
    else:
        block_b = min(_round_up(block_b, 8), _round_up(B, 8))

    grid = (pl.cdiv(B, block_b),)

    # Real work, not padded work.
    flops = 2 * B * IN_FEATURES * HIDDEN + 2 * B * HIDDEN * OUT_FEATURES
    bytes_accessed = (
        B * IN_FEATURES * 4                      # x (f32 in)
        + IN_FEATURES * HIDDEN * 2               # w1 bf16
        + HIDDEN * OUT_FEATURES * 2              # w2 bf16
        + HIDDEN * 4 + OUT_FEATURES * 4          # biases f32
        + B * OUT_FEATURES * 4                   # output f32
    )

    out = pl.pallas_call(
        mlp_kernel,
        out_shape=jax.ShapeDtypeStruct((B, OUT_FEATURES), jnp.float32),
        grid_spec=pltpu.PrefetchScalarGridSpec(
            num_scalar_prefetch=0,
            grid=grid,
            in_specs=[
                # x tile streams with the batch grid axis (f32; cast in-kernel).
                pl.BlockSpec((block_b, IN_FEATURES), lambda i: (i, 0)),
                # Weights/biases: constant block index -> fetched once,
                # VMEM-resident across all batch steps (~60 KB total).
                pl.BlockSpec((IN_FEATURES, HIDDEN), lambda i: (0, 0)),
                pl.BlockSpec((1, HIDDEN), lambda i: (0, 0)),
                pl.BlockSpec((HIDDEN, OUT_FEATURES), lambda i: (0, 0)),
                pl.BlockSpec((1, OUT_FEATURES), lambda i: (0, 0)),
            ],
            # Unpadded 10-wide output block (legal: equals full array dim) ->
            # ~12x less HBM writeback than the old 128-wide padded output.
            out_specs=pl.BlockSpec((block_b, OUT_FEATURES), lambda i: (i, 0)),
        ),
        compiler_params=pltpu.CompilerParams(
            # Batch tiles are independent -> shard across TCs on v7x megacore.
            dimension_semantics=("parallel",),
        ),
        cost_estimate=pl.CostEstimate(
            flops=flops, transcendentals=0, bytes_accessed=bytes_accessed),
    )(x, w1_bf, b1_f, w2_bf, b2_f)

    return out


def init_params(key):
    """Deterministic PyTorch-like init: U(-1/sqrt(fan_in), 1/sqrt(fan_in))."""
    k1, k2, k3, k4 = jax.random.split(key, 4)
    bound1 = 1.0 / jnp.sqrt(IN_FEATURES)
    bound2 = 1.0 / jnp.sqrt(HIDDEN)
    w1 = jax.random.uniform(k1, (IN_FEATURES, HIDDEN), jnp.float32, -bound1, bound1)
    b1 = jax.random.uniform(k2, (1, HIDDEN), jnp.float32, -bound1, bound1)
    w2 = jax.random.uniform(k3, (HIDDEN, OUT_FEATURES), jnp.float32, -bound2, bound2)
    b2 = jax.random.uniform(k4, (1, OUT_FEATURES), jnp.float32, -bound2, bound2)
    return w1, b1, w2, b2


if __name__ == "__main__":
    key = jax.random.PRNGKey(0)
    kx, kp = jax.random.split(key)

    batch = 8
    x = jax.random.normal(kx, (batch, IN_FEATURES), jnp.float32)
    w1, b1, w2, b2 = init_params(kp)

    # One-time param prep (casts hoisted out of the per-call path).
    params = prepare_params(w1, b1, w2, b2)

    out = mlp_forward(x, *params)
    out = jax.block_until_ready(out)
    assert out.shape == (batch, OUT_FEATURES)

    # Reference 1: bf16-consistent (same rounding as the kernel, f32 accumulate).
    xb = x.astype(jnp.bfloat16).astype(jnp.float32)
    w1b = w1.astype(jnp.bfloat16).astype(jnp.float32)
    w2b = w2.astype(jnp.bfloat16).astype(jnp.float32)
    h_ref = jnp.maximum(xb @ w1b + b1, 0.0).astype(jnp.bfloat16).astype(jnp.float32)
    ref_bf = h_ref @ w2b + b2
    assert jnp.allclose(out, ref_bf, atol=1e-3, rtol=1e-3)

    # Reference 2: original full-f32 PyTorch semantics (looser tol due to bf16 operands).
    ref_f32 = jnp.maximum(x @ w1 + b1, 0.0) @ w2 + b2
    assert jnp.allclose(out, ref_f32, atol=5e-2, rtol=5e-2)

    print("KERNEL_OK")
</pallas_src>

<mosaic_0001>
module attributes {stable_mosaic.version = 11 : i64} {
  func.func @mlp_kernel(%arg0: i32, %arg1: memref<8x50xf32, #tpu.memory_space<vmem>>, %arg2: memref<50x512xbf16, #tpu.memory_space<vmem>>, %arg3: memref<1x512xf32, #tpu.memory_space<vmem>>, %arg4: memref<512x10xbf16, #tpu.memory_space<vmem>>, %arg5: memref<1x10xf32, #tpu.memory_space<vmem>>, %arg6: memref<8x10xf32, #tpu.memory_space<vmem>>) attributes {dimension_semantics = [#tpu.dimension_semantics<parallel>], iteration_bounds = array<i64: 1>, scalar_prefetch = 0 : i64, scratch_operands = 0 : i64, tpu.core_type = #tpu.core_type<tc>, window_params = [{transform_indices = @transform_0, window_bounds = array<i64: 8, 50>}, {pipeline_mode = #tpu.pipeline_mode<synchronous>, transform_indices = @transform_1, window_bounds = array<i64: 50, 512>}, {pipeline_mode = #tpu.pipeline_mode<synchronous>, transform_indices = @transform_2, window_bounds = array<i64: 1, 512>}, {pipeline_mode = #tpu.pipeline_mode<synchronous>, transform_indices = @transform_3, window_bounds = array<i64: 512, 10>}, {pipeline_mode = #tpu.pipeline_mode<synchronous>, transform_indices = @transform_4, window_bounds = array<i64: 1, 10>}, {transform_indices = @transform_5, window_bounds = array<i64: 8, 10>}]} {
    %c0 = arith.constant 0 : index
    %c0_0 = arith.constant 0 : index
    %0 = vector.load %arg1[%c0, %c0_0] : memref<8x50xf32, #tpu.memory_space<vmem>>, vector<8x50xf32>
    %1 = arith.truncf %0 : vector<8x50xf32> to vector<8x50xbf16>
    %c0_1 = arith.constant 0 : index
    %c0_2 = arith.constant 0 : index
    %2 = vector.load %arg2[%c0_1, %c0_2] : memref<50x512xbf16, #tpu.memory_space<vmem>>, vector<50x512xbf16>
    %cst = arith.constant dense<0.000000e+00> : vector<8x512xf32>
    %3 = tpu.matmul %1, %2, %cst {dimension_numbers = #tpu.dot_dimension_numbers<[1], [0], [0], [1], [0, 0, 1, 1], [], []>} : vector<8x50xbf16>, vector<50x512xbf16>, vector<8x512xf32> -> vector<8x512xf32>
    %c0_3 = arith.constant 0 : index
    %c0_4 = arith.constant 0 : index
    %4 = vector.load %arg3[%c0_3, %c0_4] : memref<1x512xf32, #tpu.memory_space<vmem>>, vector<1x512xf32>
    %5 = vector.broadcast %4 : vector<1x512xf32> to vector<8x512xf32>
    %6 = arith.addf %3, %5 : vector<8x512xf32>
    %cst_5 = arith.constant 0.000000e+00 : f32
    %7 = vector.broadcast %cst_5 : f32 to vector<8x512xf32>
    %8 = arith.maximumf %6, %7 : vector<8x512xf32>
    %9 = arith.truncf %8 : vector<8x512xf32> to vector<8x512xbf16>
    %c0_6 = arith.constant 0 : index
    %c0_7 = arith.constant 0 : index
    %10 = vector.load %arg4[%c0_6, %c0_7] : memref<512x10xbf16, #tpu.memory_space<vmem>>, vector<512x10xbf16>
    %cst_8 = arith.constant dense<0.000000e+00> : vector<8x10xf32>
    %11 = tpu.matmul %9, %10, %cst_8 {dimension_numbers = #tpu.dot_dimension_numbers<[1], [0], [0], [1], [0, 0, 1, 1], [], []>} : vector<8x512xbf16>, vector<512x10xbf16>, vector<8x10xf32> -> vector<8x10xf32>
    %c0_9 = arith.constant 0 : index
    %c0_10 = arith.constant 0 : index
    %12 = vector.load %arg5[%c0_9, %c0_10] : memref<1x10xf32, #tpu.memory_space<vmem>>, vector<1x10xf32>
    %13 = vector.broadcast %12 : vector<1x10xf32> to vector<8x10xf32>
    %14 = arith.addf %11, %13 : vector<8x10xf32>
    %c0_11 = arith.constant 0 : index
    %c0_12 = arith.constant 0 : index
    %15 = vector.load %arg6[%c0_11, %c0_12] : memref<8x10xf32, #tpu.memory_space<vmem>>, vector<8x10xf32>
    tpu.vector_store %arg6[%c0_11, %c0_12], %14 {strides = array<i32>} : memref<8x10xf32, #tpu.memory_space<vmem>>, vector<8x10xf32>,
    return
  }
  func.func @transform_0(%arg0: i32) -> (i32, i32) {
    %c0_i32 = arith.constant 0 : i32
    %c0_i32_0 = arith.constant 0 : i32
    return %arg0, %c0_i32 : i32, i32
  }
  func.func @transform_1(%arg0: i32) -> (i32, i32) {
    %c0_i32 = arith.constant 0 : i32
    %c0_i32_0 = arith.constant 0 : i32
    %c0_i32_1 = arith.constant 0 : i32
    return %c0_i32, %c0_i32_0 : i32, i32
  }
  func.func @transform_2(%arg0: i32) -> (i32, i32) {
    %c0_i32 = arith.constant 0 : i32
    %c0_i32_0 = arith.constant 0 : i32
    %c0_i32_1 = arith.constant 0 : i32
    return %c0_i32, %c0_i32_0 : i32, i32
  }
  func.func @transform_3(%arg0: i32) -> (i32, i32) {
    %c0_i32 = arith.constant 0 : i32
    %c0_i32_0 = arith.constant 0 : i32
    %c0_i32_1 = arith.constant 0 : i32
    return %c0_i32, %c0_i32_0 : i32, i32
  }
  func.func @transform_4(%arg0: i32) -> (i32, i32) {
    %c0_i32 = arith.constant 0 : i32
    %c0_i32_0 = arith.constant 0 : i32
    %c0_i32_1 = arith.constant 0 : i32
    return %c0_i32, %c0_i32_0 : i32, i32
  }
  func.func @transform_5(%arg0: i32) -> (i32, i32) {
    %c0_i32 = arith.constant 0 : i32
    %c0_i32_0 = arith.constant 0 : i32
    return %arg0, %c0_i32 : i32, i32
  }
}

</mosaic_0001>

<llo_original>
// kernel: tpu_custom_call.1
$region0: #{tpu_custom_call.1}
  #allocation0 [shape = 'u32[]', space=smem, size = 0x4, offset = 0x4, fixed_abs, tag = 'smem constant byte address 0x4 - core index']
  #allocation1 [shape = 'u32[72,128]{1,0:T(1,128)}', space=vmem, size = 0x9000, scoped, tag = 'internal scratch']
  %s0 = inlined_call_operand.vmem [shape: f32[8,50], index: 0, kind: input, shape index: {}]
  %s1 = inlined_call_operand.vmem [shape: bf16[50,512], index: 1, kind: input, shape index: {}]
  %s2 = inlined_call_operand.vmem [shape: f32[1,512], index: 2, kind: input, shape index: {}]
  %s3 = inlined_call_operand.vmem [shape: bf16[512,10], index: 3, kind: input, shape index: {}]
  %s4 = inlined_call_operand.vmem [shape: f32[1,10], index: 4, kind: input, shape index: {}]
  %s5 = inlined_call_operand.hbm [shape: f32[8,10], index: 5, kind: output, shape index: {}]
  %s6 = sld [smem:[#allocation0]]
  $region30: #{tpu_custom_call.1} parent=0
    _
  %s8 = ssub.s32 1, %s6
  %s9 = scalar_select 0, %s8, %s6
  $region1: #{tpu_custom_call.1} parent=0
    #allocation2 [shape = 'u8[4096]{0}', space=vmem, size = 0x1000, scoped, tag = 'output window, operand 0, single buffered']
    #allocation3 [shape = 's32[1]{0}', space=sflag, size = 0x4, scoped, tag = 'scoped memory for tpu_custom_call.1']
    %10 = vsyncpa [#allocation3], 0
    // Predicated region
    $region2: #{tpu_custom_call.1} parent=1 // pred_check
      _
    $region3: #{tpu_custom_call.1} parent=1 // pred_check_branch
      %12 = sbr.rel (0) target = $region5
    $region4: #{tpu_custom_call.1} parent=1 // pred_region
      _
    $region5: #{tpu_custom_call.1} parent=1 // pred_fallthru
      _
    // Predicated region
    $region6: #{tpu_custom_call.1} parent=1 // pred_check
      _
    $region7: #{tpu_custom_call.1} parent=1 // pred_check_branch
      %14 = sbr.rel (0) target = $region9
    $region8: #{tpu_custom_call.1} parent=1 // pred_region
      _
    $region9: #{tpu_custom_call.1} parent=1 // pred_fallthru
      _
    // Predicated region
    $region10: #{tpu_custom_call.1} parent=1 // pred_check
      _
    $region11: #{tpu_custom_call.1} parent=1 // pred_check_branch
      %16 = sbr.rel (0) target = $region13
    $region12: #{tpu_custom_call.1} parent=1 // pred_region
      _
    $region13: #{tpu_custom_call.1} parent=1 // pred_fallthru
      _
    // Predicated region
    $region14: #{tpu_custom_call.1} parent=1 // pred_check
      _
    $region15: #{tpu_custom_call.1} parent=1 // pred_check_branch
      %18 = sbr.rel (0) target = $region17
    $region16: #{tpu_custom_call.1} parent=1 // pred_region
      _
    $region17: #{tpu_custom_call.1} parent=1 // pred_fallthru
      _
    // Predicated region
    $region18: #{tpu_custom_call.1} parent=1 // pred_check
      _
    $region19: #{tpu_custom_call.1} parent=1 // pred_check_branch
      %20 = sbr.rel (0) target = $region21
    $region20: #{tpu_custom_call.1} parent=1 // pred_region
      _
    $region21: #{tpu_custom_call.1} parent=1 // pred_fallthru
      _
    %v22 = vld [vmem:[%s0] sm:$0xff]
    %v23 = vpack.c.bf16 %v22, %v22
    %v24 = vld [vmem:[%s1] sm:$0xff]
    %v25 = vld [vmem:[%s1 + $0x8] sm:$0xff]
    %v26 = vld [vmem:[%s1 + $0x10] sm:$0xff]
    %v27 = vld [vmem:[%s1 + $0x18] sm:$0xff]
    %v28 = vld [vmem:[%s1 + $0x20] sm:$0xff]
    %v29 = vld [vmem:[%s1 + $0x28] sm:$0xff]
    %v30 = vld [vmem:[%s1 + $0x30] sm:$0xff]
    %v31 = vld [vmem:[%s1 + $0x38] sm:$0xff]
    %v32 = vld [vmem:[%s1 + $0x40] sm:$0xff]
    %v33 = vld [vmem:[%s1 + $0x48] sm:$0xff]
    %v34 = vld [vmem:[%s1 + $0x50] sm:$0xff]
    %v35 = vld [vmem:[%s1 + $0x58] sm:$0xff]
    %v36 = vld [vmem:[%s1 + $0x60] sm:$0x11]
    %v37 = vld [vmem:[%s1 + $0x68] sm:$0x11]
    %v38 = vld [vmem:[%s2] sm:$0xf]
    %v40 = vperm.slane %v38, 0
    %v41 = vperm.slane %v38, 1
    %v42 = vperm.slane %v38, 2
    %v43 = vperm.slane %v38, 3
    %v62 = vunpack.c.l.b16 %v24
    %v63 = vunpack.c.h.b16 %v24
    %v64 = vunpack.c.l.b16 %v25
    %v65 = vunpack.c.h.b16 %v25
    %v66 = vunpack.c.l.b16 %v26
    %v67 = vunpack.c.h.b16 %v26
    %v68 = vunpack.c.l.b16 %v27
    %v69 = vunpack.c.h.b16 %v27
    %v70 = vunpack.c.l.b16 %v28
    %v71 = vunpack.c.h.b16 %v28
    %v72 = vunpack.c.l.b16 %v29
    %v73 = vunpack.c.h.b16 %v29
    %v74 = vunpack.c.l.b16 %v30
    %v75 = vunpack.c.h.b16 %v30
    %v76 = vunpack.c.l.b16 %v31
    %v77 = vunpack.c.h.b16 %v31
    %v78 = vunpack.c.l.b16 %v32
    %v79 = vunpack.c.h.b16 %v32
    %v80 = vunpack.c.l.b16 %v33
    %v81 = vunpack.c.h.b16 %v33
    %v82 = vunpack.c.l.b16 %v34
    %v83 = vunpack.c.h.b16 %v34
    %v84 = vunpack.c.l.b16 %v35
    %v85 = vunpack.c.h.b16 %v35
    %v86 = vunpack.c.l.b16 %v36
    %v87 = vunpack.c.h.b16 %v36
    %v88 = vunpack.c.l.b16 %v37
    %v89 = vunpack.c.h.b16 %v37
    %v90 = vpack.c.b16 %v66, %v62
    %v91 = vpack.c.b16 %v67, %v63
    %v92 = vpack.c.b16 %v68, %v64
    %v93 = vpack.c.b16 %v69, %v65
    %v94 = vpack.c.b16 %v74, %v70
    %v95 = vpack.c.b16 %v75, %v71
    %v96 = vpack.c.b16 %v76, %v72
    %v97 = vpack.c.b16 %v77, %v73
    %v98 = vpack.c.b16 %v82, %v78
    %v99 = vpack.c.b16 %v83, %v79
    %v100 = vpack.c.b16 %v84, %v80
    %v101 = vpack.c.b16 %v85, %v81
    %v102 = vpack.c.b16 %v86, %v86
    %v103 = vpack.c.b16 %v87, %v87
    %v104 = vpack.c.b16 %v88, %v88
    %v105 = vpack.c.b16 %v89, %v89
    %vm118 = vcmask 408576
    %v120 = vsel %vm118, %v23, 0
    %vm122 = vcmask 1040384
    %v124 = vsel %vm122, %v102, 0
    %v127 = vsel %vm122, %v103, 0
    %v130 = vsel %vm122, %v104, 0
    %v133 = vsel %vm122, %v105, 0
    %135 = vmatpush.bf16.msra.mxu0 0
    %136 = vmatpush.bf16.msra.mxu0 0
    %137 = vmatpush.bf16.msra.mxu0 0
    %138 = vmatpush.bf16.msra.mxu0 0
    %139 = vmatpush.bf16.msra.mxu0 %v124
    %140 = vmatpush.bf16.msra.mxu0 %v98
    %141 = vmatpush.bf16.msra.mxu0 %v94
    %142 = vmatpush.bf16.msra.mxu0 %v90
    %143 = vmatmul.bf16.gmra.mxu0 %v120
    %v144 = vpop.f32.mrf.mxu0
    %v145 = vadd.f32 %v40, %v144
    %v146 = vpop.f32.mrf.mxu0
    %147 = vdwg.mxu0
    %148 = vmatpush.bf16.msra.mxu0 0
    %149 = vmatpush.bf16.msra.mxu0 0
    %150 = vmatpush.bf16.msra.mxu0 0
    %151 = vmatpush.bf16.msra.mxu0 0
    %152 = vmatpush.bf16.msra.mxu0 %v127
    %153 = vmatpush.bf16.msra.mxu0 %v99
    %154 = vmatpush.bf16.msra.mxu0 %v95
    %155 = vmatpush.bf16.msra.mxu0 %v91
    %156 = vmatmul.bf16.gmra.mxu0 %v120
    %v157 = vpop.f32.mrf.mxu0
    %v158 = vadd.f32 %v41, %v157
    %v159 = vpop.f32.mrf.mxu0
    %160 = vdwg.mxu0
    %161 = vmatpush.bf16.msra.mxu0 0
    %162 = vmatpush.bf16.msra.mxu0 0
    %163 = vmatpush.bf16.msra.mxu0 0
    %164 = vmatpush.bf16.msra.mxu0 0
    %165 = vmatpush.bf16.msra.mxu0 %v130
    %166 = vmatpush.bf16.msra.mxu0 %v100
    %167 = vmatpush.bf16.msra.mxu0 %v96
    %168 = vmatpush.bf16.msra.mxu0 %v92
    %169 = vmatmul.bf16.gmra.mxu0 %v120
    %v170 = vpop.f32.mrf.mxu0
    %v171 = vadd.f32 %v42, %v170
    %v172 = vpop.f32.mrf.mxu0
    %173 = vdwg.mxu0
    %174 = vmatpush.bf16.msra.mxu0 0
    %175 = vmatpush.bf16.msra.mxu0 0
    %176 = vmatpush.bf16.msra.mxu0 0
    %177 = vmatpush.bf16.msra.mxu0 0
    %178 = vmatpush.bf16.msra.mxu0 %v133
    %179 = vmatpush.bf16.msra.mxu0 %v101
    %180 = vmatpush.bf16.msra.mxu0 %v97
    %181 = vmatpush.bf16.msra.mxu0 %v93
    %182 = vmatmul.bf16.gmra.mxu0 %v120
    %v183 = vpop.f32.mrf.mxu0
    %v184 = vadd.f32 %v43, %v183
    %v185 = vpop.f32.mrf.mxu0
    %186 = vdwg.mxu0
    %v187 = vmax.f32 %v145, 0.0
    %v188 = vmax.f32 %v158, 0.0
    %v189 = vmax.f32 %v171, 0.0
    %v190 = vmax.f32 %v184, 0.0
    %v191 = vpack.c.bf16 %v187, %v187
    %v192 = vpack.c.bf16 %v188, %v188
    %v193 = vpack.c.bf16 %v189, %v189
    %v194 = vpack.c.bf16 %v190, %v190
    %v195 = vld [vmem:[%s3] sm:$0xf]
    %v196 = vld [vmem:[%s3 + $0x4] sm:$0xf]
    %v197 = vld [vmem:[%s3 + $0x8] sm:$0xf]
    %v198 = vld [vmem:[%s3 + $0xc] sm:$0xf]
    %v199 = vld [vmem:[%s3 + $0x10] sm:$0xf]
    %v200 = vld [vmem:[%s3 + $0x14] sm:$0xf]
    %v201 = vld [vmem:[%s3 + $0x18] sm:$0xf]
    %v202 = vld [vmem:[%s3 + $0x1c] sm:$0xf]
    %v203 = vld [vmem:[%s3 + $0x20] sm:$0xf]
    %v204 = vld [vmem:[%s3 + $0x24] sm:$0xf]
    %v205 = vld [vmem:[%s3 + $0x28] sm:$0xf]
    %v206 = vld [vmem:[%s3 + $0x2c] sm:$0xf]
    %v207 = vld [vmem:[%s3 + $0x30] sm:$0xf]
    %v208 = vld [vmem:[%s3 + $0x34] sm:$0xf]
    %v209 = vld [vmem:[%s3 + $0x38] sm:$0xf]
    %v210 = vld [vmem:[%s3 + $0x3c] sm:$0xf]
    %v211 = vld [vmem:[%s3 + $0x40] sm:$0xf]
    %v212 = vld [vmem:[%s3 + $0x44] sm:$0xf]
    %v213 = vld [vmem:[%s3 + $0x48] sm:$0xf]
    %v214 = vld [vmem:[%s3 + $0x4c] sm:$0xf]
    %v215 = vld [vmem:[%s3 + $0x50] sm:$0xf]
    %v216 = vld [vmem:[%s3 + $0x54] sm:$0xf]
    %v217 = vld [vmem:[%s3 + $0x58] sm:$0xf]
    %v218 = vld [vmem:[%s3 + $0x5c] sm:$0xf]
    %v219 = vld [vmem:[%s3 + $0x60] sm:$0xf]
    %v220 = vld [vmem:[%s3 + $0x64] sm:$0xf]
    %v221 = vld [vmem:[%s3 + $0x68] sm:$0xf]
    %v222 = vld [vmem:[%s3 + $0x6c] sm:$0xf]
    %v223 = vld [vmem:[%s3 + $0x70] sm:$0xf]
    %v224 = vld [vmem:[%s3 + $0x74] sm:$0xf]
    %v225 = vld [vmem:[%s3 + $0x78] sm:$0xf]
    %v226 = vld [vmem:[%s3 + $0x7c] sm:$0xf]
    %v227 = vld [vmem:[%s3 + $0x80] sm:$0xf]
    %v228 = vld [vmem:[%s3 + $0x84] sm:$0xf]
    %v229 = vld [vmem:[%s3 + $0x88] sm:$0xf]
    %v230 = vld [vmem:[%s3 + $0x8c] sm:$0xf]
    %v231 = vld [vmem:[%s3 + $0x90] sm:$0xf]
    %v232 = vld [vmem:[%s3 + $0x94] sm:$0xf]
    %v233 = vld [vmem:[%s3 + $0x98] sm:$0xf]
    %v234 = vld [vmem:[%s3 + $0x9c] sm:$0xf]
    %v235 = vld [vmem:[%s3 + $0xa0] sm:$0xf]
    %v236 = vld [vmem:[%s3 + $0xa4] sm:$0xf]
    %v237 = vld [vmem:[%s3 + $0xa8] sm:$0xf]
    %v238 = vld [vmem:[%s3 + $0xac] sm:$0xf]
    %v239 = vld [vmem:[%s3 + $0xb0] sm:$0xf]
    %v240 = vld [vmem:[%s3 + $0xb4] sm:$0xf]
    %v241 = vld [vmem:[%s3 + $0xb8] sm:$0xf]
    %v242 = vld [vmem:[%s3 + $0xbc] sm:$0xf]
    %v243 = vld [vmem:[%s3 + $0xc0] sm:$0xf]
    %v244 = vld [vmem:[%s3 + $0xc4] sm:$0xf]
    %v245 = vld [vmem:[%s3 + $0xc8] sm:$0xf]
    %v246 = vld [vmem:[%s3 + $0xcc] sm:$0xf]
    %v247 = vld [vmem:[%s3 + $0xd0] sm:$0xf]
    %v248 = vld [vmem:[%s3 + $0xd4] sm:$0xf]
    %v249 = vld [vmem:[%s3 + $0xd8] sm:$0xf]
    %v250 = vld [vmem:[%s3 + $0xdc] sm:$0xf]
    %v251 = vld [vmem:[%s3 + $0xe0] sm:$0xf]
    %v252 = vld [vmem:[%s3 + $0xe4] sm:$0xf]
    %v253 = vld [vmem:[%s3 + $0xe8] sm:$0xf]
    %v254 = vld [vmem:[%s3 + $0xec] sm:$0xf]
    %v255 = vld [vmem:[%s3 + $0xf0] sm:$0xf]
    %v256 = vld [vmem:[%s3 + $0xf4] sm:$0xf]
    %v257 = vld [vmem:[%s3 + $0xf8] sm:$0xf]
    %v258 = vld [vmem:[%s3 + $0xfc] sm:$0xf]
    %v259 = vld [vmem:[%s4] sm:$0x1]
    %v261 = vperm.slane %v259, 0
    %v327 = vunpack.c.l.b16 %v195
    %v328 = vunpack.c.l.b16 %v196
    %v329 = vunpack.c.l.b16 %v197
    %v330 = vunpack.c.l.b16 %v198
    %v331 = vunpack.c.l.b16 %v199
    %v332 = vunpack.c.l.b16 %v200
    %v333 = vunpack.c.l.b16 %v201
    %v334 = vunpack.c.l.b16 %v202
    %v335 = vunpack.c.l.b16 %v203
    %v336 = vunpack.c.l.b16 %v204
    %v337 = vunpack.c.l.b16 %v205
    %v338 = vunpack.c.l.b16 %v206
    %v339 = vunpack.c.l.b16 %v207
    %v340 = vunpack.c.l.b16 %v208
    %v341 = vunpack.c.l.b16 %v209
    %v342 = vunpack.c.l.b16 %v210
    %v343 = vunpack.c.l.b16 %v211
    %v344 = vunpack.c.l.b16 %v212
    %v345 = vunpack.c.l.b16 %v213
    %v346 = vunpack.c.l.b16 %v214
    %v347 = vunpack.c.l.b16 %v215
    %v348 = vunpack.c.l.b16 %v216
    %v349 = vunpack.c.l.b16 %v217
    %v350 = vunpack.c.l.b16 %v218
    %v351 = vunpack.c.l.b16 %v219
    %v352 = vunpack.c.l.b16 %v220
    %v353 = vunpack.c.l.b16 %v221
    %v354 = vunpack.c.l.b16 %v222
    %v355 = vunpack.c.l.b16 %v223
    %v356 = vunpack.c.l.b16 %v224
    %v357 = vunpack.c.l.b16 %v225
    %v358 = vunpack.c.l.b16 %v226
    %v359 = vunpack.c.l.b16 %v227
    %v360 = vunpack.c.l.b16 %v228
    %v361 = vunpack.c.l.b16 %v229
    %v362 = vunpack.c.l.b16 %v230
    %v363 = vunpack.c.l.b16 %v231
    %v364 = vunpack.c.l.b16 %v232
    %v365 = vunpack.c.l.b16 %v233
    %v366 = vunpack.c.l.b16 %v234
    %v367 = vunpack.c.l.b16 %v235
    %v368 = vunpack.c.l.b16 %v236
    %v369 = vunpack.c.l.b16 %v237
    %v370 = vunpack.c.l.b16 %v238
    %v371 = vunpack.c.l.b16 %v239
    %v372 = vunpack.c.l.b16 %v240
    %v373 = vunpack.c.l.b16 %v241
    %v374 = vunpack.c.l.b16 %v242
    %v375 = vunpack.c.l.b16 %v243
    %v376 = vunpack.c.l.b16 %v244
    %v377 = vunpack.c.l.b16 %v245
    %v378 = vunpack.c.l.b16 %v246
    %v379 = vunpack.c.l.b16 %v247
    %v380 = vunpack.c.l.b16 %v248
    %v381 = vunpack.c.l.b16 %v249
    %v382 = vunpack.c.l.b16 %v250
    %v383 = vunpack.c.l.b16 %v251
    %v384 = vunpack.c.l.b16 %v252
    %v385 = vunpack.c.l.b16 %v253
    %v386 = vunpack.c.l.b16 %v254
    %v387 = vunpack.c.l.b16 %v255
    %v388 = vunpack.c.l.b16 %v256
    %v389 = vunpack.c.l.b16 %v257
    %v390 = vunpack.c.l.b16 %v258
    %v391 = vpack.c.b16 %v328, %v327
    %v392 = vpack.c.b16 %v330, %v329
    %v393 = vpack.c.b16 %v332, %v331
    %v394 = vpack.c.b16 %v334, %v333
    %v395 = vpack.c.b16 %v336, %v335
    %v396 = vpack.c.b16 %v338, %v337
    %v397 = vpack.c.b16 %v340, %v339
    %v398 = vpack.c.b16 %v342, %v341
    %v399 = vpack.c.b16 %v344, %v343
    %v400 = vpack.c.b16 %v346, %v345
    %v401 = vpack.c.b16 %v348, %v347
    %v402 = vpack.c.b16 %v350, %v349
    %v403 = vpack.c.b16 %v352, %v351
    %v404 = vpack.c.b16 %v354, %v353
    %v405 = vpack.c.b16 %v356, %v355
    %v406 = vpack.c.b16 %v358, %v357
    %v407 = vpack.c.b16 %v360, %v359
    %v408 = vpack.c.b16 %v362, %v361
    %v409 = vpack.c.b16 %v364, %v363
    %v410 = vpack.c.b16 %v366, %v365
    %v411 = vpack.c.b16 %v368, %v367
    %v412 = vpack.c.b16 %v370, %v369
    %v413 = vpack.c.b16 %v372, %v371
    %v414 = vpack.c.b16 %v374, %v373
    %v415 = vpack.c.b16 %v376, %v375
    %v416 = vpack.c.b16 %v378, %v377
    %v417 = vpack.c.b16 %v380, %v379
    %v418 = vpack.c.b16 %v382, %v381
    %v419 = vpack.c.b16 %v384, %v383
    %v420 = vpack.c.b16 %v386, %v385
    %v421 = vpack.c.b16 %v388, %v387
    %v422 = vpack.c.b16 %v390, %v389
    %455 = vmatpush.bf16.msra.mxu0 %v398
    %456 = vmatpush.bf16.msra.mxu0 %v397
    %457 = vmatpush.bf16.msra.mxu0 %v396
    %458 = vmatpush.bf16.msra.mxu0 %v395
    %459 = vmatpush.bf16.msra.mxu0 %v394
    %460 = vmatpush.bf16.msra.mxu0 %v393
    %461 = vmatpush.bf16.msra.mxu0 %v392
    %462 = vmatpush.bf16.msra.mxu0 %v391
    %463 = vmatmul.bf16.gmra.mxu0 %v191
    %v464 = vpop.f32.mrf.mxu0
    %v465 = vadd.f32 %v261, %v464
    %v466 = vpop.f32.mrf.mxu0
    %467 = vdwg.mxu0
    %468 = vmatpush.bf16.msra.mxu0 %v406
    %469 = vmatpush.bf16.msra.mxu0 %v405
    %470 = vmatpush.bf16.msra.mxu0 %v404
    %471 = vmatpush.bf16.msra.mxu0 %v403
    %472 = vmatpush.bf16.msra.mxu0 %v402
    %473 = vmatpush.bf16.msra.mxu0 %v401
    %474 = vmatpush.bf16.msra.mxu0 %v400
    %475 = vmatpush.bf16.msra.mxu0 %v399
    %476 = vmatmul.bf16.gmra.mxu0 %v192
    %v477 = vpop.f32.mrf.mxu0
    %v478 = vadd.f32 %v465, %v477
    %v479 = vpop.f32.mrf.mxu0
    %480 = vdwg.mxu0
    %481 = vmatpush.bf16.msra.mxu0 %v414
    %482 = vmatpush.bf16.msra.mxu0 %v413
    %483 = vmatpush.bf16.msra.mxu0 %v412
    %484 = vmatpush.bf16.msra.mxu0 %v411
    %485 = vmatpush.bf16.msra.mxu0 %v410
    %486 = vmatpush.bf16.msra.mxu0 %v409
    %487 = vmatpush.bf16.msra.mxu0 %v408
    %488 = vmatpush.bf16.msra.mxu0 %v407
    %489 = vmatmul.bf16.gmra.mxu0 %v193
    %v490 = vpop.f32.mrf.mxu0
    %v491 = vadd.f32 %v478, %v490
    %v492 = vpop.f32.mrf.mxu0
    %493 = vdwg.mxu0
    %494 = vmatpush.bf16.msra.mxu0 %v422
    %495 = vmatpush.bf16.msra.mxu0 %v421
    %496 = vmatpush.bf16.msra.mxu0 %v420
    %497 = vmatpush.bf16.msra.mxu0 %v419
    %498 = vmatpush.bf16.msra.mxu0 %v418
    %499 = vmatpush.bf16.msra.mxu0 %v417
    %500 = vmatpush.bf16.msra.mxu0 %v416
    %501 = vmatpush.bf16.msra.mxu0 %v415
    %502 = vmatmul.bf16.gmra.mxu0 %v194
    %v503 = vpop.f32.mrf.mxu0
    %v504 = vadd.f32 %v491, %v503
    %v505 = vpop.f32.mrf.mxu0
    %506 = vdwg.mxu0
    %vm507 = vcmask 80896
    %508 = vst.msk [vmem:[#allocation2] sm:$0xff] %vm507, %v504
    // Predicated region
    $region22: #{tpu_custom_call.1} parent=1 // pred_check
      _
    $region23: #{tpu_custom_call.1} parent=1 // pred_check_branch
      %510 = sbr.rel (0) target = $region25
    $region24: #{tpu_custom_call.1} parent=1 // pred_region
      %512 = vsyncadd [#allocation3], 0
      %s514 = sshll.u32 [#allocation2], 4
      %s515 = int_to_ptr.vmem [resolvable:$true] %s514
      %s516 = sshll.u32 %s5, 4
      %s517 = int_to_ptr.hbm [resolvable:$true] %s516
      %519 = dma.vmem_to_hbm [thread:$0]  %s515, 128, %s517, [#allocation3]
    $region25: #{tpu_custom_call.1} parent=1 // pred_fallthru
      _
    // Predicated region
    $region26: #{tpu_custom_call.1} parent=1 // pred_check
      _
    $region27: #{tpu_custom_call.1} parent=1 // pred_check_branch
      %521 = sbr.rel (0) target = $region29
    $region28: #{tpu_custom_call.1} parent=1 // pred_region
      %523 = dma.done [#allocation3], 128
    $region29: #{tpu_custom_call.1} parent=1 // pred_fallthru
      _
    %524 = vsyncpa [#allocation3], 1

</llo_original>
